<compile_context>
chip_gen: v6e
topology: v6e:2x2x1
jax: 0.10.0
libtpu: 0.0.40
codegen_flags: <defaults>
</compile_context>

<pallas_src>
import math

import jax
import jax.numpy as jnp
from jax.experimental import pallas as pl
from jax.experimental.pallas import tpu as pltpu


# ----------------------------------------------------------------------------
# Schedule (betas_for_alpha_bar, cosine) — plain JAX, matches the PyTorch math.
# ----------------------------------------------------------------------------
def make_cosine_schedule(T: int, max_beta: float = 0.999):
    i = jnp.arange(T, dtype=jnp.float32)
    t1 = i / T
    t2 = (i + 1.0) / T

    def alpha_bar_fn(t):
        return jnp.cos((t + 0.008) / 1.008 * math.pi / 2.0) ** 2

    betas = jnp.minimum(1.0 - alpha_bar_fn(t2) / alpha_bar_fn(t1), max_beta)
    alphas = 1.0 - betas
    alpha_bars = jnp.cumprod(alphas)
    alpha_prev_bars = jnp.concatenate([jnp.ones((1,), jnp.float32), alpha_bars[:-1]])
    sigmas = jnp.sqrt((1.0 - alpha_prev_bars) / (1.0 - alpha_bars)) * jnp.sqrt(
        1.0 - alpha_bars / alpha_prev_bars
    )
    posterior_variance = betas * (1.0 - alpha_prev_bars) / (1.0 - alpha_bars)
    posterior_log_variance_clipped = jnp.log(
        jnp.concatenate([posterior_variance[1:2], posterior_variance[1:]])
    )
    return dict(
        betas=betas,
        alphas=alphas,
        alpha_bars=alpha_bars,
        alpha_prev_bars=alpha_prev_bars,
        sigmas=sigmas,
        posterior_variance=posterior_variance,
        posterior_log_variance_clipped=posterior_log_variance_clipped,
    )


# ----------------------------------------------------------------------------
# Fused Pallas kernel: q-sample + block-diag denoiser linear + tanh + mask.
# Single grid step; all B batch elements and all three streams processed at
# once.  Streams are packed on the lane axis: [lhand | rhand | obj | zero pad].
# ----------------------------------------------------------------------------
def _make_fused_kernel(B, F, DH, DO, DP):
    def kernel(sab_ref, s1mab_ref, ll_ref, lr_ref, lo_ref,      # SMEM scalars (B,)
               x_ref, eps_ref, w_ref, bias_ref,                 # VMEM inputs
               out_ref):                                        # VMEM output
        # ---- q-sample in f32 (VPU): x_tilde = sqrt(ab)*x + sqrt(1-ab)*eps ----
        xt_rows = []
        for b in range(B):                       # B is tiny & static
            sab = sab_ref[b]
            s1mab = s1mab_ref[b]
            xt_rows.append(sab * x_ref[b] + s1mab * eps_ref[b])        # (F, DP)
        xt = xt_rows[0] if B == 1 else jnp.concatenate(xt_rows, axis=0)  # (B*F, DP)

        # ---- one MXU matmul for all batches & streams (bf16 ops, f32 acc) ----
        h = jnp.dot(xt.astype(jnp.bfloat16), w_ref[...],
                    preferred_element_type=jnp.float32)                # (B*F, DP)

        # ---- per-batch bias + tanh + in-kernel validity mask + store ----
        frame = jax.lax.broadcasted_iota(jnp.int32, (F, DP), 0)
        lane = jax.lax.broadcasted_iota(jnp.int32, (F, DP), 1)
        for b in range(B):
            limit = jnp.where(lane < DH, ll_ref[b],
                     jnp.where(lane < 2 * DH, lr_ref[b],
                      jnp.where(lane < 2 * DH + DO, lo_ref[b], 0)))
            mask = (frame < limit).astype(jnp.float32)                 # (F, DP)
            hb = h[b * F:(b + 1) * F] + bias_ref[b]                    # (F,DP)+(1,DP)
            out_ref[b] = jnp.tanh(hb) * mask

    return kernel


def run_denoiser_fused(sqrt_ab, sqrt_1mab, len_l, len_r, len_o,
                       x_all, eps_all, W_all, bias_all, DH, DO):
    """x_all, eps_all: (B, F, DP) f32; W_all: (DP, DP) bf16; bias_all: (B,1,DP)."""
    B, F, DP = x_all.shape
    smem = pl.BlockSpec(memory_space=pltpu.MemorySpace.SMEM)
    kernel = _make_fused_kernel(B, F, DH, DO, DP)

    out = pl.pallas_call(
        kernel,
        grid=(1,),
        in_specs=[
            smem, smem,                                       # sqrt(ab), sqrt(1-ab)
            smem, smem, smem,                                 # valid lengths l/r/o
            pl.BlockSpec((B, F, DP), lambda i: (0, 0, 0)),    # x (packed)
            pl.BlockSpec((B, F, DP), lambda i: (0, 0, 0)),    # eps (packed)
            pl.BlockSpec((DP, DP), lambda i: (0, 0)),         # block-diag W (bf16)
            pl.BlockSpec((B, 1, DP), lambda i: (0, 0, 0)),    # per-batch bias
        ],
        out_specs=pl.BlockSpec((B, F, DP), lambda i: (0, 0, 0)),
        out_shape=jax.ShapeDtypeStruct((B, F, DP), jnp.float32),
        compiler_params=pltpu.CompilerParams(
            dimension_semantics=("parallel",)),
    )(sqrt_ab, sqrt_1mab, len_l, len_r, len_o, x_all, eps_all, W_all, bias_all)
    return out


# ----------------------------------------------------------------------------
# Diffusion.forward (training path: timesteps=None, get_target=True)
# ----------------------------------------------------------------------------
def diffusion_forward(params, schedule, x_lhand, x_rhand, x_obj, obj_feat,
                      enc_text, valid_mask_lhand, valid_mask_rhand,
                      valid_mask_obj, key, get_target=True):
    assert enc_text is not None
    alpha_bars = schedule["alpha_bars"]
    T = alpha_bars.shape[0]
    B, F, DH = x_lhand.shape
    DO = x_obj.shape[-1]
    D_used = 2 * DH + DO
    DP = ((D_used + 127) // 128) * 128           # lane-dense padded width
    pad = DP - D_used

    k_t, k_l, k_r, k_o = jax.random.split(key, 4)
    timesteps = jax.random.randint(k_t, (B,), 0, T)                 # randint(0, T)
    used_alpha_bars = alpha_bars[timesteps]                         # (B,)
    sqrt_ab = jnp.sqrt(used_alpha_bars)
    sqrt_1mab = jnp.sqrt(1.0 - used_alpha_bars)

    epsilon_lhand = jax.random.normal(k_l, x_lhand.shape, jnp.float32)
    epsilon_rhand = jax.random.normal(k_r, x_rhand.shape, jnp.float32)
    epsilon_obj = jax.random.normal(k_o, x_obj.shape, jnp.float32)

    # ---- layout plumbing (plain JAX): pack the three streams on the lane axis
    zpad3 = jnp.zeros((B, F, pad), jnp.float32)
    x_all = jnp.concatenate([x_lhand, x_rhand, x_obj, zpad3], axis=-1)
    eps_all = jnp.concatenate([epsilon_lhand, epsilon_rhand, epsilon_obj, zpad3],
                              axis=-1)

    # Block-diagonal denoiser weight, zero-padded to DP, bf16 MXU operand.
    W_all = jnp.zeros((DP, DP), jnp.float32)
    W_all = W_all.at[:DH, :DH].set(params["W_l"])
    W_all = W_all.at[DH:2 * DH, DH:2 * DH].set(params["W_r"])
    W_all = W_all.at[2 * DH:D_used, 2 * DH:D_used].set(params["W_o"])
    W_all = W_all.astype(jnp.bfloat16)

    # Synthetic denoiser conditioning (glue): text / obj_feat / timestep biases.
    t_norm = (timesteps.astype(jnp.float32) / T)[:, None]                  # (B,1)
    bias_hand = enc_text @ params["W_text_h"] + t_norm * params["b_t_h"]   # (B,DH)
    bias_lhand = bias_hand + params["b_l"]
    bias_rhand = bias_hand + params["b_r"]
    bias_obj = (enc_text @ params["W_text_o"] + obj_feat @ params["W_objfeat"]
                + t_norm * params["b_t_o"] + params["b_o"])                # (B,DO)
    bias_all = jnp.concatenate(
        [bias_lhand, bias_rhand, bias_obj, jnp.zeros((B, pad), jnp.float32)],
        axis=-1)[:, None, :]                                               # (B,1,DP)

    # Valid masks -> per-batch lengths (SMEM scalars); mask rebuilt in-kernel.
    # TODO(synk): assumes frame-prefix validity masks; arbitrary masks would
    # need a lane-dense mask input instead of lengths.
    len_l = jnp.sum(valid_mask_lhand.astype(jnp.float32), -1).astype(jnp.int32)
    len_r = jnp.sum(valid_mask_rhand.astype(jnp.float32), -1).astype(jnp.int32)
    len_o = jnp.sum(valid_mask_obj.astype(jnp.float32), -1).astype(jnp.int32)

    out = run_denoiser_fused(sqrt_ab, sqrt_1mab, len_l, len_r, len_o,
                             x_all, eps_all, W_all, bias_all, DH, DO)

    pred_X0_lhand = out[..., :DH]
    pred_X0_rhand = out[..., DH:2 * DH]
    pred_X0_obj = out[..., 2 * DH:D_used]

    return_list = [pred_X0_lhand, pred_X0_rhand, pred_X0_obj]
    if get_target:
        return_list.append(epsilon_lhand)
        return_list.append(epsilon_rhand)
        return_list.append(epsilon_obj)
        return_list.append(used_alpha_bars[:, None, None])          # (B, 1, 1)
    return return_list

# TODO(synk): sampling()/ddpm_loop() is a host-side Python loop (tqdm) over an
# external model — not a single-kernel op; only forward() is implemented here.


# ----------------------------------------------------------------------------
# Deterministic parameter init for the synthetic denoiser "model".
# ----------------------------------------------------------------------------
def init_params(key, hand_nfeats, obj_nfeats, text_dim, objfeat_dim):
    ks = jax.random.split(key, 10)
    s = 0.1
    return dict(
        W_l=s * jax.random.normal(ks[0], (hand_nfeats, hand_nfeats), jnp.float32),
        W_r=s * jax.random.normal(ks[1], (hand_nfeats, hand_nfeats), jnp.float32),
        W_o=s * jax.random.normal(ks[2], (obj_nfeats, obj_nfeats), jnp.float32),
        W_text_h=s * jax.random.normal(ks[3], (text_dim, hand_nfeats), jnp.float32),
        W_text_o=s * jax.random.normal(ks[4], (text_dim, obj_nfeats), jnp.float32),
        W_objfeat=s * jax.random.normal(ks[5], (objfeat_dim, obj_nfeats), jnp.float32),
        b_t_h=s * jax.random.normal(ks[6], (hand_nfeats,), jnp.float32),
        b_t_o=s * jax.random.normal(ks[7], (obj_nfeats,), jnp.float32),
        b_l=jnp.zeros((hand_nfeats,), jnp.float32),
        b_r=jnp.zeros((hand_nfeats,), jnp.float32),
        b_o=jnp.zeros((obj_nfeats,), jnp.float32),
    )


if __name__ == "__main__":
    B, F = 2, 16                 # batch, max_nframes
    hand_nfeats, obj_nfeats = 32, 16
    text_dim, objfeat_dim = 24, 8
    T = 1000

    root = jax.random.PRNGKey(0)
    k_params, k_xl, k_xr, k_xo, k_obj, k_txt, k_fwd = jax.random.split(root, 7)

    params = init_params(k_params, hand_nfeats, obj_nfeats, text_dim, objfeat_dim)
    schedule = make_cosine_schedule(T)

    x_lhand = jax.random.normal(k_xl, (B, F, hand_nfeats), jnp.float32)
    x_rhand = jax.random.normal(k_xr, (B, F, hand_nfeats), jnp.float32)
    x_obj = jax.random.normal(k_xo, (B, F, obj_nfeats), jnp.float32)
    obj_feat = jax.random.normal(k_obj, (B, objfeat_dim), jnp.float32)
    enc_text = jax.random.normal(k_txt, (B, text_dim), jnp.float32)

    # valid masks: first batch fully valid, second valid for 12/16 frames.
    frame_idx = jnp.arange(F)[None, :]
    lengths = jnp.array([F, 12])[:, None]
    valid_mask = (frame_idx < lengths).astype(jnp.float32)           # (B, F)

    outs = diffusion_forward(params, schedule, x_lhand, x_rhand, x_obj, obj_feat,
                             enc_text, valid_mask, valid_mask, valid_mask,
                             k_fwd, get_target=True)
    outs = jax.block_until_ready(outs)

    assert outs[0].shape == (B, F, hand_nfeats)
    assert outs[1].shape == (B, F, hand_nfeats)
    assert outs[2].shape == (B, F, obj_nfeats)
    assert outs[6].shape == (B, 1, 1)
    assert all(bool(jnp.all(jnp.isfinite(o))) for o in outs)
    # masked-out frames must be exactly zero (in-kernel iota mask check)
    assert bool(jnp.all(outs[0][1, 12:] == 0.0))
    assert bool(jnp.all(outs[2][1, 12:] == 0.0))
    print("KERNEL_OK")
</pallas_src>

<mosaic_0001>
module attributes {stable_mosaic.version = 11 : i64} {
  func.func @kernel(%arg0: i32, %arg1: memref<2xf32, #tpu.memory_space<smem>>, %arg2: memref<2xf32, #tpu.memory_space<smem>>, %arg3: memref<2xi32, #tpu.memory_space<smem>>, %arg4: memref<2xi32, #tpu.memory_space<smem>>, %arg5: memref<2xi32, #tpu.memory_space<smem>>, %arg6: memref<2x16x128xf32, #tpu.memory_space<vmem>>, %arg7: memref<2x16x128xf32, #tpu.memory_space<vmem>>, %arg8: memref<128x128xbf16, #tpu.memory_space<vmem>>, %arg9: memref<2x1x128xf32, #tpu.memory_space<vmem>>, %arg10: memref<2x16x128xf32, #tpu.memory_space<vmem>>) attributes {dimension_semantics = [#tpu.dimension_semantics<parallel>], iteration_bounds = array<i64: 1>, scalar_prefetch = 0 : i64, scratch_operands = 0 : i64, tpu.core_type = #tpu.core_type<tc>, window_params = [{transform_indices = @transform_0, window_bounds = array<i64: 2>}, {transform_indices = @transform_1, window_bounds = array<i64: 2>}, {transform_indices = @transform_2, window_bounds = array<i64: 2>}, {transform_indices = @transform_3, window_bounds = array<i64: 2>}, {transform_indices = @transform_4, window_bounds = array<i64: 2>}, {pipeline_mode = #tpu.pipeline_mode<synchronous>, transform_indices = @transform_5, window_bounds = array<i64: 2, 16, 128>}, {pipeline_mode = #tpu.pipeline_mode<synchronous>, transform_indices = @transform_6, window_bounds = array<i64: 2, 16, 128>}, {pipeline_mode = #tpu.pipeline_mode<synchronous>, transform_indices = @transform_7, window_bounds = array<i64: 128, 128>}, {pipeline_mode = #tpu.pipeline_mode<synchronous>, transform_indices = @transform_8, window_bounds = array<i64: 2, 1, 128>}, {pipeline_mode = #tpu.pipeline_mode<synchronous>, transform_indices = @transform_9, window_bounds = array<i64: 2, 16, 128>}]} {
    %c0 = arith.constant 0 : index
    %0 = memref.load %arg1[%c0] : memref<2xf32, #tpu.memory_space<smem>>
    %c0_0 = arith.constant 0 : index
    %1 = memref.load %arg2[%c0_0] : memref<2xf32, #tpu.memory_space<smem>>
    %c0_1 = arith.constant 0 : index
    %c0_2 = arith.constant 0 : index
    %c0_3 = arith.constant 0 : index
    %2 = vector.load %arg6[%c0_1, %c0_2, %c0_3] : memref<2x16x128xf32, #tpu.memory_space<vmem>>, vector<1x16x128xf32>
    %3 = vector.shape_cast %2 : vector<1x16x128xf32> to vector<16x128xf32>
    %4 = vector.broadcast %0 : f32 to vector<16x128xf32>
    %5 = arith.mulf %4, %3 : vector<16x128xf32>
    %c0_4 = arith.constant 0 : index
    %c0_5 = arith.constant 0 : index
    %c0_6 = arith.constant 0 : index
    %6 = vector.load %arg7[%c0_4, %c0_5, %c0_6] : memref<2x16x128xf32, #tpu.memory_space<vmem>>, vector<1x16x128xf32>
    %7 = vector.shape_cast %6 : vector<1x16x128xf32> to vector<16x128xf32>
    %8 = vector.broadcast %1 : f32 to vector<16x128xf32>
    %9 = arith.mulf %8, %7 : vector<16x128xf32>
    %10 = arith.addf %5, %9 : vector<16x128xf32>
    %c1 = arith.constant 1 : index
    %11 = memref.load %arg1[%c1] : memref<2xf32, #tpu.memory_space<smem>>
    %c1_7 = arith.constant 1 : index
    %12 = memref.load %arg2[%c1_7] : memref<2xf32, #tpu.memory_space<smem>>
    %c1_8 = arith.constant 1 : index
    %c0_9 = arith.constant 0 : index
    %c0_10 = arith.constant 0 : index
    %13 = vector.load %arg6[%c1_8, %c0_9, %c0_10] : memref<2x16x128xf32, #tpu.memory_space<vmem>>, vector<1x16x128xf32>
    %14 = vector.shape_cast %13 : vector<1x16x128xf32> to vector<16x128xf32>
    %15 = vector.broadcast %11 : f32 to vector<16x128xf32>
    %16 = arith.mulf %15, %14 : vector<16x128xf32>
    %c1_11 = arith.constant 1 : index
    %c0_12 = arith.constant 0 : index
    %c0_13 = arith.constant 0 : index
    %17 = vector.load %arg7[%c1_11, %c0_12, %c0_13] : memref<2x16x128xf32, #tpu.memory_space<vmem>>, vector<1x16x128xf32>
    %18 = vector.shape_cast %17 : vector<1x16x128xf32> to vector<16x128xf32>
    %19 = vector.broadcast %12 : f32 to vector<16x128xf32>
    %20 = arith.mulf %19, %18 : vector<16x128xf32>
    %21 = arith.addf %16, %20 : vector<16x128xf32>
    %22 = tpu.concatenate %10, %21 in 0 : vector<16x128xf32>, vector<16x128xf32> -> vector<32x128xf32>
    %23 = arith.truncf %22 : vector<32x128xf32> to vector<32x128xbf16>
    %c0_14 = arith.constant 0 : index
    %c0_15 = arith.constant 0 : index
    %24 = vector.load %arg8[%c0_14, %c0_15] : memref<128x128xbf16, #tpu.memory_space<vmem>>, vector<128x128xbf16>
    %cst = arith.constant dense<0.000000e+00> : vector<32x128xf32>
    %25 = tpu.matmul %23, %24, %cst {dimension_numbers = #tpu.dot_dimension_numbers<[1], [0], [0], [1], [0, 0, 1, 1], [], []>} : vector<32x128xbf16>, vector<128x128xbf16>, vector<32x128xf32> -> vector<32x128xf32>
    %26 = tpu.iota {dimensions = array<i32: 0>} : vector<16x128xi32>
    %27 = tpu.iota {dimensions = array<i32: 1>} : vector<16x128xi32>
    %c32_i32 = arith.constant 32 : i32
    %28 = vector.broadcast %c32_i32 : i32 to vector<16x128xi32>
    %29 = arith.cmpi slt, %27, %28 : vector<16x128xi32>
    %c0_16 = arith.constant 0 : index
    %30 = memref.load %arg3[%c0_16] : memref<2xi32, #tpu.memory_space<smem>>
    %c64_i32 = arith.constant 64 : i32
    %31 = vector.broadcast %c64_i32 : i32 to vector<16x128xi32>
    %32 = arith.cmpi slt, %27, %31 : vector<16x128xi32>
    %c0_17 = arith.constant 0 : index
    %33 = memref.load %arg4[%c0_17] : memref<2xi32, #tpu.memory_space<smem>>
    %c80_i32 = arith.constant 80 : i32
    %34 = vector.broadcast %c80_i32 : i32 to vector<16x128xi32>
    %35 = arith.cmpi slt, %27, %34 : vector<16x128xi32>
    %c0_18 = arith.constant 0 : index
    %36 = memref.load %arg5[%c0_18] : memref<2xi32, #tpu.memory_space<smem>>
    %c0_i32 = arith.constant 0 : i32
    %37 = vector.broadcast %36 : i32 to vector<16x128xi32>
    %38 = vector.broadcast %c0_i32 : i32 to vector<16x128xi32>
    %39 = arith.select %35, %37, %38 : vector<16x128xi1>, vector<16x128xi32>
    %40 = vector.broadcast %33 : i32 to vector<16x128xi32>
    %41 = arith.select %32, %40, %39 : vector<16x128xi1>, vector<16x128xi32>
    %42 = vector.broadcast %30 : i32 to vector<16x128xi32>
    %43 = arith.select %29, %42, %41 : vector<16x128xi1>, vector<16x128xi32>
    %44 = arith.cmpi slt, %26, %43 : vector<16x128xi32>
    %45 = arith.extui %44 : vector<16x128xi1> to vector<16x128xi32>
    %46 = arith.sitofp %45 : vector<16x128xi32> to vector<16x128xf32>
    %47 = vector.extract_strided_slice %25 {offsets = [0, 0], sizes = [16, 128], strides = [1, 1]} : vector<32x128xf32> to vector<16x128xf32>
    %c0_19 = arith.constant 0 : index
    %c0_20 = arith.constant 0 : index
    %c0_21 = arith.constant 0 : index
    %48 = vector.load %arg9[%c0_19, %c0_20, %c0_21] : memref<2x1x128xf32, #tpu.memory_space<vmem>>, vector<1x1x128xf32>
    %49 = vector.shape_cast %48 : vector<1x1x128xf32> to vector<1x128xf32>
    %50 = vector.broadcast %49 : vector<1x128xf32> to vector<16x128xf32>
    %51 = arith.addf %47, %50 : vector<16x128xf32>
    %52 = math.tanh %51 : vector<16x128xf32>
    %53 = arith.mulf %52, %46 : vector<16x128xf32>
    %c0_22 = arith.constant 0 : index
    %c0_23 = arith.constant 0 : index
    %c0_24 = arith.constant 0 : index
    %54 = vector.load %arg10[%c0_22, %c0_23, %c0_24] : memref<2x16x128xf32, #tpu.memory_space<vmem>>, vector<1x16x128xf32>
    %55 = vector.shape_cast %54 : vector<1x16x128xf32> to vector<16x128xf32>
    %56 = vector.shape_cast %53 : vector<16x128xf32> to vector<1x16x128xf32>
    tpu.vector_store %arg10[%c0_22, %c0_23, %c0_24], %56 {strides = array<i32>} : memref<2x16x128xf32, #tpu.memory_space<vmem>>, vector<1x16x128xf32>,
    %c32_i32_25 = arith.constant 32 : i32
    %57 = vector.broadcast %c32_i32_25 : i32 to vector<16x128xi32>
    %58 = arith.cmpi slt, %27, %57 : vector<16x128xi32>
    %c1_26 = arith.constant 1 : index
    %59 = memref.load %arg3[%c1_26] : memref<2xi32, #tpu.memory_space<smem>>
    %c64_i32_27 = arith.constant 64 : i32
    %60 = vector.broadcast %c64_i32_27 : i32 to vector<16x128xi32>
    %61 = arith.cmpi slt, %27, %60 : vector<16x128xi32>
    %c1_28 = arith.constant 1 : index
    %62 = memref.load %arg4[%c1_28] : memref<2xi32, #tpu.memory_space<smem>>
    %c80_i32_29 = arith.constant 80 : i32
    %63 = vector.broadcast %c80_i32_29 : i32 to vector<16x128xi32>
    %64 = arith.cmpi slt, %27, %63 : vector<16x128xi32>
    %c1_30 = arith.constant 1 : index
    %65 = memref.load %arg5[%c1_30] : memref<2xi32, #tpu.memory_space<smem>>
    %c0_i32_31 = arith.constant 0 : i32
    %66 = vector.broadcast %65 : i32 to vector<16x128xi32>
    %67 = vector.broadcast %c0_i32_31 : i32 to vector<16x128xi32>
    %68 = arith.select %64, %66, %67 : vector<16x128xi1>, vector<16x128xi32>
    %69 = vector.broadcast %62 : i32 to vector<16x128xi32>
    %70 = arith.select %61, %69, %68 : vector<16x128xi1>, vector<16x128xi32>
    %71 = vector.broadcast %59 : i32 to vector<16x128xi32>
    %72 = arith.select %58, %71, %70 : vector<16x128xi1>, vector<16x128xi32>
    %73 = arith.cmpi slt, %26, %72 : vector<16x128xi32>
    %74 = arith.extui %73 : vector<16x128xi1> to vector<16x128xi32>
    %75 = arith.sitofp %74 : vector<16x128xi32> to vector<16x128xf32>
    %76 = vector.extract_strided_slice %25 {offsets = [16, 0], sizes = [16, 128], strides = [1, 1]} : vector<32x128xf32> to vector<16x128xf32>
    %c1_32 = arith.constant 1 : index
    %c0_33 = arith.constant 0 : index
    %c0_34 = arith.constant 0 : index
    %77 = vector.load %arg9[%c1_32, %c0_33, %c0_34] : memref<2x1x128xf32, #tpu.memory_space<vmem>>, vector<1x1x128xf32>
    %78 = vector.shape_cast %77 : vector<1x1x128xf32> to vector<1x128xf32>
    %79 = vector.broadcast %78 : vector<1x128xf32> to vector<16x128xf32>
    %80 = arith.addf %76, %79 : vector<16x128xf32>
    %81 = math.tanh %80 : vector<16x128xf32>
    %82 = arith.mulf %81, %75 : vector<16x128xf32>
    %c1_35 = arith.constant 1 : index
    %c0_36 = arith.constant 0 : index
    %c0_37 = arith.constant 0 : index
    %83 = vector.load %arg10[%c1_35, %c0_36, %c0_37] : memref<2x16x128xf32, #tpu.memory_space<vmem>>, vector<1x16x128xf32>
    %84 = vector.shape_cast %83 : vector<1x16x128xf32> to vector<16x128xf32>
    %85 = vector.shape_cast %82 : vector<16x128xf32> to vector<1x16x128xf32>
    tpu.vector_store %arg10[%c1_35, %c0_36, %c0_37], %85 {strides = array<i32>} : memref<2x16x128xf32, #tpu.memory_space<vmem>>, vector<1x16x128xf32>,
    return
  }
  func.func @transform_0(%arg0: i32) -> i32 {
    %c0_i32 = arith.constant 0 : i32
    %c0_i32_0 = arith.constant 0 : i32
    return %c0_i32 : i32
  }
  func.func @transform_1(%arg0: i32) -> i32 {
    %c0_i32 = arith.constant 0 : i32
    %c0_i32_0 = arith.constant 0 : i32
    return %c0_i32 : i32
  }
  func.func @transform_2(%arg0: i32) -> i32 {
    %c0_i32 = arith.constant 0 : i32
    %c0_i32_0 = arith.constant 0 : i32
    return %c0_i32 : i32
  }
  func.func @transform_3(%arg0: i32) -> i32 {
    %c0_i32 = arith.constant 0 : i32
    %c0_i32_0 = arith.constant 0 : i32
    return %c0_i32 : i32
  }
  func.func @transform_4(%arg0: i32) -> i32 {
    %c0_i32 = arith.constant 0 : i32
    %c0_i32_0 = arith.constant 0 : i32
    return %c0_i32 : i32
  }
  func.func @transform_5(%arg0: i32) -> (i32, i32, i32) {
    %c0_i32 = arith.constant 0 : i32
    %c0_i32_0 = arith.constant 0 : i32
    %c0_i32_1 = arith.constant 0 : i32
    %c0_i32_2 = arith.constant 0 : i32
    return %c0_i32, %c0_i32_0, %c0_i32_1 : i32, i32, i32
  }
  func.func @transform_6(%arg0: i32) -> (i32, i32, i32) {
    %c0_i32 = arith.constant 0 : i32
    %c0_i32_0 = arith.constant 0 : i32
    %c0_i32_1 = arith.constant 0 : i32
    %c0_i32_2 = arith.constant 0 : i32
    return %c0_i32, %c0_i32_0, %c0_i32_1 : i32, i32, i32
  }
  func.func @transform_7(%arg0: i32) -> (i32, i32) {
    %c0_i32 = arith.constant 0 : i32
    %c0_i32_0 = arith.constant 0 : i32
    %c0_i32_1 = arith.constant 0 : i32
    return %c0_i32, %c0_i32_0 : i32, i32
  }
  func.func @transform_8(%arg0: i32) -> (i32, i32, i32) {
    %c0_i32 = arith.constant 0 : i32
    %c0_i32_0 = arith.constant 0 : i32
    %c0_i32_1 = arith.constant 0 : i32
    %c0_i32_2 = arith.constant 0 : i32
    return %c0_i32, %c0_i32_0, %c0_i32_1 : i32, i32, i32
  }
  func.func @transform_9(%arg0: i32) -> (i32, i32, i32) {
    %c0_i32 = arith.constant 0 : i32
    %c0_i32_0 = arith.constant 0 : i32
    %c0_i32_1 = arith.constant 0 : i32
    %c0_i32_2 = arith.constant 0 : i32
    return %c0_i32, %c0_i32_0, %c0_i32_1 : i32, i32, i32
  }
}

</mosaic_0001>

<llo_original>
// kernel: tpu_custom_call.1
$region0: #{tpu_custom_call.1}
  #allocation0 [shape = 'u32[]', space=smem, size = 0x4, offset = 0x4, fixed_abs, tag = 'smem constant byte address 0x4 - core index']
  #allocation1 [shape = 'u32[144,128]{1,0:T(1,128)}', space=vmem, size = 0x12000, scoped, tag = 'internal scratch']
  %s0 = inlined_call_operand.hbm [shape: f32[2], index: 0, kind: input, shape index: {}]
  %s1 = inlined_call_operand.vmem [shape: f32[2], index: 1, kind: input, shape index: {}]
  %s2 = inlined_call_operand.hbm [shape: s32[2], index: 2, kind: input, shape index: {}]
  %s3 = inlined_call_operand.vmem [shape: s32[2], index: 3, kind: input, shape index: {}]
  %s4 = inlined_call_operand.vmem [shape: s32[2], index: 4, kind: input, shape index: {}]
  %s5 = inlined_call_operand.hbm [shape: f32[2,16,128], index: 5, kind: input, shape index: {}]
  %s6 = inlined_call_operand.hbm [shape: f32[2,16,128], index: 6, kind: input, shape index: {}]
  %s7 = inlined_call_operand.hbm [shape: bf16[128,128], index: 7, kind: input, shape index: {}]
  %s8 = inlined_call_operand.vmem [shape: f32[2,1,128], index: 8, kind: input, shape index: {}]
  %s9 = inlined_call_operand.hbm [shape: f32[2,16,128], index: 9, kind: output, shape index: {}]
  %s10 = sld [smem:[#allocation0]]
  $region78: #{tpu_custom_call.1} parent=0
    _
  %s12 = ssub.s32 1, %s10
  %s13 = scalar_select 0, %s12, %s10
  $region1: #{tpu_custom_call.1} parent=0
    #allocation2 [shape = 'u8[512]{0}', space=smem, size = 0x200, scoped, tag = 'input window, operand 0, single buffered']
    #allocation3 [shape = 's32[1]{0}', space=sflag, size = 0x4, scoped, tag = 'scoped memory for tpu_custom_call.1']
    #allocation4 [shape = 's32[1]{0}', space=sflag, size = 0x4, scoped, tag = 'scoped memory for tpu_custom_call.1']
    #allocation5 [shape = 's32[1]{0}', space=sflag, size = 0x4, scoped, tag = 'scoped memory for tpu_custom_call.1']
    #allocation6 [shape = 's32[1]{0}', space=sflag, size = 0x4, scoped, tag = 'scoped memory for tpu_custom_call.1']
    #allocation7 [shape = 'u8[512]{0}', space=smem, size = 0x200, scoped, tag = 'input window, operand 1, single buffered']
    #allocation8 [shape = 'u8[512]{0}', space=smem, size = 0x200, scoped, tag = 'input window, operand 2, single buffered']
    #allocation9 [shape = 's32[1]{0}', space=sflag, size = 0x4, scoped, tag = 'scoped memory for tpu_custom_call.1']
    #allocation10 [shape = 'u8[512]{0}', space=smem, size = 0x200, scoped, tag = 'input window, operand 3, single buffered']
    #allocation11 [shape = 's32[1]{0}', space=sflag, size = 0x4, scoped, tag = 'scoped memory for tpu_custom_call.1']
    #allocation12 [shape = 'u8[512]{0}', space=smem, size = 0x200, scoped, tag = 'input window, operand 4, single buffered']
    #allocation13 [shape = 'u8[16384]{0}', space=vmem, size = 0x4000, scoped, tag = 'input window, operand 5, single buffered']
    #allocation14 [shape = 'u8[16384]{0}', space=vmem, size = 0x4000, scoped, tag = 'input window, operand 6, single buffered']
    #allocation15 [shape = 's32[1]{0}', space=sflag, size = 0x4, scoped, tag = 'scoped memory for tpu_custom_call.1']
    #allocation16 [shape = 'u8[32768]{0}', space=vmem, size = 0x8000, scoped, tag = 'input window, operand 7, single buffered']
    #allocation17 [shape = 'u8[16384]{0}', space=vmem, size = 0x4000, scoped, tag = 'output window, operand 0, single buffered']
    %14 = vsyncpa [#allocation5], 0
    %15 = vsyncpa [#allocation6], 0
    %16 = vsyncpa [#allocation9], 0
    %17 = vsyncpa [#allocation11], 0
    %18 = vsyncpa [#allocation3], 0
    %19 = vsyncpa [#allocation15], 0
    %20 = vsyncpa [#allocation4], 0
    // Predicated region
    $region2: #{tpu_custom_call.1} parent=1 // pred_check
      _
    $region3: #{tpu_custom_call.1} parent=1 // pred_check_branch
      %22 = sbr.rel (0) target = $region5
    $region4: #{tpu_custom_call.1} parent=1 // pred_region
      %s24 = ssub.s32 16, 16
      %25 = vsyncadd [#allocation5], %s24
      %28 = dma.hbm_to_smem %s0, 16, [#allocation2], [#allocation5]
    $region5: #{tpu_custom_call.1} parent=1 // pred_fallthru
      _
    // Predicated region
    $region6: #{tpu_custom_call.1} parent=1 // pred_check
      _
    $region7: #{tpu_custom_call.1} parent=1 // pred_check_branch
      %30 = sbr.rel (0) target = $region9
    $region8: #{tpu_custom_call.1} parent=1 // pred_region
      %s32 = ssub.s32 16, 16
      %33 = vsyncadd [#allocation6], %s32
      %s35 = sshll.u32 %s1, 4
      %s36 = int_to_ptr.vmem [resolvable:$true] %s35
      %38 = dma.vmem_to_smem %s36, 16, [#allocation7], [#allocation6]
    $region9: #{tpu_custom_call.1} parent=1 // pred_fallthru
      _
    // Predicated region
    $region10: #{tpu_custom_call.1} parent=1 // pred_check
      _
    $region11: #{tpu_custom_call.1} parent=1 // pred_check_branch
      %40 = sbr.rel (0) target = $region13
    $region12: #{tpu_custom_call.1} parent=1 // pred_region
      %s42 = ssub.s32 16, 16
      %43 = vsyncadd [#allocation9], %s42
      %46 = dma.hbm_to_smem %s2, 16, [#allocation8], [#allocation9]
    $region13: #{tpu_custom_call.1} parent=1 // pred_fallthru
      _
    // Predicated region
    $region14: #{tpu_custom_call.1} parent=1 // pred_check
      _
    $region15: #{tpu_custom_call.1} parent=1 // pred_check_branch
      %48 = sbr.rel (0) target = $region17
    $region16: #{tpu_custom_call.1} parent=1 // pred_region
      %s50 = ssub.s32 16, 16
      %51 = vsyncadd [#allocation11], %s50
      %s53 = sshll.u32 %s3, 4
      %s54 = int_to_ptr.vmem [resolvable:$true] %s53
      %56 = dma.vmem_to_smem %s54, 16, [#allocation10], [#allocation11]
    $region17: #{tpu_custom_call.1} parent=1 // pred_fallthru
      _
    // Predicated region
    $region18: #{tpu_custom_call.1} parent=1 // pred_check
      _
    $region19: #{tpu_custom_call.1} parent=1 // pred_check_branch
      %58 = sbr.rel (0) target = $region21
    $region20: #{tpu_custom_call.1} parent=1 // pred_region
      %s60 = ssub.s32 16, 16
      %61 = vsyncadd [#allocation11], %s60
      %s63 = sshll.u32 %s4, 4
      %s64 = int_to_ptr.vmem [resolvable:$true] %s63
      %66 = dma.vmem_to_smem %s64, 16, [#allocation12], [#allocation11]
    $region21: #{tpu_custom_call.1} parent=1 // pred_fallthru
      _
    // Predicated region
    $region22: #{tpu_custom_call.1} parent=1 // pred_check
      _
    $region23: #{tpu_custom_call.1} parent=1 // pred_check_branch
      %68 = sbr.rel (0) target = $region25
    $region24: #{tpu_custom_call.1} parent=1 // pred_region
      %s70 = ssub.s32 512, 512
      %71 = vsyncadd [#allocation3], %s70
      %s72 = sshll.u32 [#allocation13], 4
      %s73 = int_to_ptr.vmem [resolvable:$true] %s72
      %78 = dma.hbm_to_vmem [thread:$0]  %s5, 512, %s73, [#allocation3], 128, 128, 8
    $region25: #{tpu_custom_call.1} parent=1 // pred_fallthru
      _
    // Predicated region
    $region26: #{tpu_custom_call.1} parent=1 // pred_check
      _
    $region27: #{tpu_custom_call.1} parent=1 // pred_check_branch
      %80 = sbr.rel (0) target = $region29
    $region28: #{tpu_custom_call.1} parent=1 // pred_region
      %s82 = ssub.s32 512, 512
      %83 = vsyncadd [#allocation15], %s82
      %s84 = sshll.u32 [#allocation14], 4
      %s85 = int_to_ptr.vmem [resolvable:$true] %s84
      %90 = dma.hbm_to_vmem [thread:$0]  %s6, 512, %s85, [#allocation15], 128, 128, 8
    $region29: #{tpu_custom_call.1} parent=1 // pred_fallthru
      _
    // Predicated region
    $region30: #{tpu_custom_call.1} parent=1 // pred_check
      _
    $region31: #{tpu_custom_call.1} parent=1 // pred_check_branch
      %92 = sbr.rel (0) target = $region33
    $region32: #{tpu_custom_call.1} parent=1 // pred_region
      %s94 = ssub.s32 1024, 1024
      %95 = vsyncadd [#allocation15], %s94
      %s96 = sshll.u32 [#allocation16], 4
      %s97 = int_to_ptr.vmem [resolvable:$true] %s96
      %102 = dma.hbm_to_vmem [thread:$0]  %s7, 1024, %s97, [#allocation15], 64, 64, 4
    $region33: #{tpu_custom_call.1} parent=1 // pred_fallthru
      _
    // Predicated region
    $region34: #{tpu_custom_call.1} parent=1 // pred_check
      _
    $region35: #{tpu_custom_call.1} parent=1 // pred_check_branch
      %104 = sbr.rel (0) target = $region37
    $region36: #{tpu_custom_call.1} parent=1 // pred_region
      _
    $region37: #{tpu_custom_call.1} parent=1 // pred_fallthru
      _
    // Predicated region
    $region38: #{tpu_custom_call.1} parent=1 // pred_check
      _
    $region39: #{tpu_custom_call.1} parent=1 // pred_check_branch
      %106 = sbr.rel (0) target = $region41
    $region40: #{tpu_custom_call.1} parent=1 // pred_region
      %107 = dma.done [#allocation5], 16
    $region41: #{tpu_custom_call.1} parent=1 // pred_fallthru
      _
    // Predicated region
    $region42: #{tpu_custom_call.1} parent=1 // pred_check
      _
    $region43: #{tpu_custom_call.1} parent=1 // pred_check_branch
      %109 = sbr.rel (0) target = $region45
    $region44: #{tpu_custom_call.1} parent=1 // pred_region
      %110 = dma.done [#allocation6], 16
    $region45: #{tpu_custom_call.1} parent=1 // pred_fallthru
      _
    // Predicated region
    $region46: #{tpu_custom_call.1} parent=1 // pred_check
      _
    $region47: #{tpu_custom_call.1} parent=1 // pred_check_branch
      %112 = sbr.rel (0) target = $region49
    $region48: #{tpu_custom_call.1} parent=1 // pred_region
      %113 = dma.done [#allocation9], 16
    $region49: #{tpu_custom_call.1} parent=1 // pred_fallthru
      _
    // Predicated region
    $region50: #{tpu_custom_call.1} parent=1 // pred_check
      _
    $region51: #{tpu_custom_call.1} parent=1 // pred_check_branch
      %115 = sbr.rel (0) target = $region53
    $region52: #{tpu_custom_call.1} parent=1 // pred_region
      %116 = dma.done [#allocation11], 16
    $region53: #{tpu_custom_call.1} parent=1 // pred_fallthru
      _
    // Predicated region
    $region54: #{tpu_custom_call.1} parent=1 // pred_check
      _
    $region55: #{tpu_custom_call.1} parent=1 // pred_check_branch
      %118 = sbr.rel (0) target = $region57
    $region56: #{tpu_custom_call.1} parent=1 // pred_region
      %119 = dma.done [#allocation11], 16
    $region57: #{tpu_custom_call.1} parent=1 // pred_fallthru
      _
    // Predicated region
    $region58: #{tpu_custom_call.1} parent=1 // pred_check
      _
    $region59: #{tpu_custom_call.1} parent=1 // pred_check_branch
      %121 = sbr.rel (0) target = $region61
    $region60: #{tpu_custom_call.1} parent=1 // pred_region
      %122 = dma.done [#allocation3], 512
    $region61: #{tpu_custom_call.1} parent=1 // pred_fallthru
      _
    // Predicated region
    $region62: #{tpu_custom_call.1} parent=1 // pred_check
      _
    $region63: #{tpu_custom_call.1} parent=1 // pred_check_branch
      %124 = sbr.rel (0) target = $region65
    $region64: #{tpu_custom_call.1} parent=1 // pred_region
      %125 = dma.done [#allocation15], 512
    $region65: #{tpu_custom_call.1} parent=1 // pred_fallthru
      _
    // Predicated region
    $region66: #{tpu_custom_call.1} parent=1 // pred_check
      _
    $region67: #{tpu_custom_call.1} parent=1 // pred_check_branch
      %127 = sbr.rel (0) target = $region69
    $region68: #{tpu_custom_call.1} parent=1 // pred_region
      %128 = dma.done [#allocation15], 1024
    $region69: #{tpu_custom_call.1} parent=1 // pred_fallthru
      _
    %129 = sfence
    %s131 = sld [smem:[#allocation2]]
    %s132 = sld [smem:[#allocation7]]
    %v133 = vld [vmem:[#allocation13] sm:$0xff]
    %v134 = vld [vmem:[#allocation13 + $0x8] sm:$0xff]
    %v135 = vstv %s131
    %v136 = vmul.f32 %v135, %v133
    %v137 = vmul.f32 %v135, %v134
    %v138 = vld [vmem:[#allocation14] sm:$0xff]
    %v139 = vld [vmem:[#allocation14 + $0x8] sm:$0xff]
    %v140 = vstv %s132
    %v141 = vmul.f32 %v140, %v138
    %v142 = vmul.f32 %v140, %v139
    %v143 = vadd.f32 %v136, %v141
    %v144 = vadd.f32 %v137, %v142
    %s145 = sld [smem:[#allocation2 + $0x1]]
    %s146 = sld [smem:[#allocation7 + $0x1]]
    %s147 = scalar_lea.vmem [#allocation13], 16
    %v148 = vld [vmem:[%s147] sm:$0xff]
    %v149 = vld [vmem:[%s147 + $0x8] sm:$0xff]
    %v150 = vstv %s145
    %v151 = vmul.f32 %v150, %v148
    %v152 = vmul.f32 %v150, %v149
    %s153 = scalar_lea.vmem [#allocation14], 16
    %v154 = vld [vmem:[%s153] sm:$0xff]
    %v155 = vld [vmem:[%s153 + $0x8] sm:$0xff]
    %v156 = vstv %s146
    %v157 = vmul.f32 %v156, %v154
    %v158 = vmul.f32 %v156, %v155
    %v159 = vadd.f32 %v151, %v157
    %v160 = vadd.f32 %v152, %v158
    %v161 = vpack.c.bf16 %v144, %v143
    %v162 = vpack.c.bf16 %v160, %v159
    %v163 = vld [vmem:[#allocation16] sm:$0xf]
    %v164 = vld [vmem:[#allocation16 + $0x4] sm:$0xf]
    %v165 = vld [vmem:[#allocation16 + $0x8] sm:$0xf]
    %v166 = vld [vmem:[#allocation16 + $0xc] sm:$0xf]
    %v167 = vld [vmem:[#allocation16 + $0x10] sm:$0xf]
    %v168 = vld [vmem:[#allocation16 + $0x14] sm:$0xf]
    %v169 = vld [vmem:[#allocation16 + $0x18] sm:$0xf]
    %v170 = vld [vmem:[#allocation16 + $0x1c] sm:$0xf]
    %v171 = vld [vmem:[#allocation16 + $0x20] sm:$0xf]
    %v172 = vld [vmem:[#allocation16 + $0x24] sm:$0xf]
    %v173 = vld [vmem:[#allocation16 + $0x28] sm:$0xf]
    %v174 = vld [vmem:[#allocation16 + $0x2c] sm:$0xf]
    %v175 = vld [vmem:[#allocation16 + $0x30] sm:$0xf]
    %v176 = vld [vmem:[#allocation16 + $0x34] sm:$0xf]
    %v177 = vld [vmem:[#allocation16 + $0x38] sm:$0xf]
    %v178 = vld [vmem:[#allocation16 + $0x3c] sm:$0xf]
    %v195 = vunpack.c.l.b16 %v163
    %v196 = vunpack.c.l.b16 %v164
    %v197 = vunpack.c.l.b16 %v165
    %v198 = vunpack.c.l.b16 %v166
    %v199 = vunpack.c.l.b16 %v167
    %v200 = vunpack.c.l.b16 %v168
    %v201 = vunpack.c.l.b16 %v169
    %v202 = vunpack.c.l.b16 %v170
    %v203 = vunpack.c.l.b16 %v171
    %v204 = vunpack.c.l.b16 %v172
    %v205 = vunpack.c.l.b16 %v173
    %v206 = vunpack.c.l.b16 %v174
    %v207 = vunpack.c.l.b16 %v175
    %v208 = vunpack.c.l.b16 %v176
    %v209 = vunpack.c.l.b16 %v177
    %v210 = vunpack.c.l.b16 %v178
    %v211 = vpack.c.b16 %v196, %v195
    %v212 = vpack.c.b16 %v198, %v197
    %v213 = vpack.c.b16 %v200, %v199
    %v214 = vpack.c.b16 %v202, %v201
    %v215 = vpack.c.b16 %v204, %v203
    %v216 = vpack.c.b16 %v206, %v205
    %v217 = vpack.c.b16 %v208, %v207
    %v218 = vpack.c.b16 %v210, %v209
    %227 = vmatprep.subr.bf16.mxu0 0
    %228 = vmatpush1.bf16.msra.mxu0 %v218
    %229 = vmatprep.subr.bf16.mxu0 0
    %230 = vmatpush1.bf16.msra.mxu0 %v217
    %231 = vmatprep.subr.bf16.mxu0 0
    %232 = vmatpush1.bf16.msra.mxu0 %v216
    %233 = vmatprep.subr.bf16.mxu0 0
    %234 = vmatpush1.bf16.msra.mxu0 %v215
    %235 = vmatprep.subr.bf16.mxu0 0
    %236 = vmatpush1.bf16.msra.mxu0 %v214
    %237 = vmatprep.subr.bf16.mxu0 0
    %238 = vmatpush1.bf16.msra.mxu0 %v213
    %239 = vmatprep.subr.bf16.mxu0 0
    %240 = vmatpush1.bf16.msra.mxu0 %v212
    %241 = vmatprep.subr.bf16.mxu0 0
    %242 = vmatpush1.bf16.msra.mxu0 %v211
    %243 = vmatprep.subr.bf16.mxu0 0
    %244 = vmatpush2.bf16.msra.mxu0 0
    %245 = vmatprep.subr.bf16.mxu0 0
    %246 = vmatpush2.bf16.msra.mxu0 0
    %247 = vmatprep.subr.bf16.mxu0 0
    %248 = vmatpush2.bf16.msra.mxu0 0
    %249 = vmatprep.subr.bf16.mxu0 0
    %250 = vmatpush2.bf16.msra.mxu0 0
    %251 = vmatprep.subr.bf16.mxu0 0
    %252 = vmatpush2.bf16.msra.mxu0 0
    %253 = vmatprep.subr.bf16.mxu0 0
    %254 = vmatpush2.bf16.msra.mxu0 0
    %255 = vmatprep.subr.bf16.mxu0 0
    %256 = vmatpush2.bf16.msra.mxu0 0
    %257 = vmatprep.subr.bf16.mxu0 0
    %258 = vmatpush2.bf16.msra.mxu0 0
    %259 = vmatprep.mubr.bf16.mxu0 0
    %260 = vmatmul.mubr.bf16.gmra.mxu0 %v161
    %v261 = vpop.f32.mrf.mxu0
    %v262 = vadd.f32 0.0, %v261
    %v263 = vpop.f32.mrf.mxu0
    %v264 = vpop.f32.mrf.mxu0
    %v265 = vadd.f32 0.0, %v264
    %v266 = vpop.f32.mrf.mxu0
    %267 = vmatprep.mubr.bf16.mxu0 0
    %268 = vmatmul.mubr.bf16.gmra.mxu0 %v162
    %v269 = vpop.f32.mrf.mxu0
    %v270 = vadd.f32 0.0, %v269
    %v271 = vpop.f32.mrf.mxu0
    %v272 = vpop.f32.mrf.mxu0
    %v273 = vadd.f32 0.0, %v272
    %v274 = vpop.f32.mrf.mxu0
    %275 = vdwg.mxu0
    %v276 = vlaneseq
    %v277 = vshrl.u32 %v276, 7
    %v278 = vadd.s32 %v277, 8
    %v279 = vlaneseq
    %v280 = vand.u32 %v279, 127
    %vm281 = vcmp.lt.s32.totalorder %v280, 32
    %s282 = sld [smem:[#allocation8]]
    %vm283 = vcmp.lt.s32.totalorder %v280, 64
    %s284 = sld [smem:[#allocation10]]
    %vm285 = vcmp.lt.s32.totalorder %v280, 80
    %s286 = sld [smem:[#allocation12]]
    %v287 = vstv %s286
    %v288 = vsel %vm285, %v287, 0
    %v289 = vstv %s284
    %v290 = vsel %vm283, %v289, %v288
    %v291 = vstv %s282
    %v292 = vsel %vm281, %v291, %v290
    %vm293 = vcmp.lt.s32.totalorder %v277, %v292
    %vm294 = vcmp.lt.s32.totalorder %v278, %v292
    %v295 = vsel %vm293, 1, 0
    %v296 = vsel %vm294, 1, 0
    %v297 = vcvt.s32.f32 %v295
    %v298 = vcvt.s32.f32 %v296
    %v299 = vld [vmem:[%s8] sm:$0x1]
    %v301 = vlaneseq
    %v302 = vshrl.u32 %v301, 7
    %v303 = vsub.s32 0, %v302
    %v304 = vrot.slane %v299, %v303
    %v306 = vadd.f32 %v262, %v304
    %v307 = vadd.f32 %v265, %v304
    %v308 = vtanh.pop %v306
    %v309 = vtanh.pop %v307
    %v310 = vmul.f32 %v308, %v297
    %v311 = vmul.f32 %v309, %v298
    %312 = vst [vmem:[#allocation17] sm:$0xff] %v310
    %313 = vst [vmem:[#allocation17 + $0x8] sm:$0xff] %v311
    %s314 = sld [smem:[#allocation8 + $0x1]]
    %s315 = sld [smem:[#allocation10 + $0x1]]
    %s316 = sld [smem:[#allocation12 + $0x1]]
    %v317 = vstv %s316
    %v318 = vsel %vm285, %v317, 0
    %v319 = vstv %s315
    %v320 = vsel %vm283, %v319, %v318
    %v321 = vstv %s314
    %v322 = vsel %vm281, %v321, %v320
    %vm323 = vcmp.lt.s32.totalorder %v277, %v322
    %vm324 = vcmp.lt.s32.totalorder %v278, %v322
    %v325 = vsel %vm323, 1, 0
    %v326 = vsel %vm324, 1, 0
    %v327 = vcvt.s32.f32 %v325
    %v328 = vcvt.s32.f32 %v326
    %s329 = scalar_lea.vmem %s8, 1
    %v330 = vld [vmem:[%s329] sm:$0x1]
    %v332 = vlaneseq
    %v333 = vshrl.u32 %v332, 7
    %v334 = vsub.s32 0, %v333
    %v335 = vrot.slane %v330, %v334
    %v337 = vadd.f32 %v270, %v335
    %v338 = vadd.f32 %v273, %v335
    %v339 = vtanh.pop %v337
    %v340 = vtanh.pop %v338
    %v341 = vmul.f32 %v339, %v327
    %v342 = vmul.f32 %v340, %v328
    %s343 = scalar_lea.vmem [#allocation17], 16
    %344 = vst [vmem:[%s343] sm:$0xff] %v341
    %345 = vst [vmem:[%s343 + $0x8] sm:$0xff] %v342
    // Predicated region
    $region70: #{tpu_custom_call.1} parent=1 // pred_check
      _
    $region71: #{tpu_custom_call.1} parent=1 // pred_check_branch
      %347 = sbr.rel (0) target = $region73
    $region72: #{tpu_custom_call.1} parent=1 // pred_region
      %s349 = ssub.s32 512, 512
      %350 = vsyncadd [#allocation4], %s349
      %s351 = sshll.u32 [#allocation17], 4
      %s352 = int_to_ptr.vmem [resolvable:$true] %s351
      %357 = dma.vmem_to_hbm [thread:$0]  %s352, 512, %s9, [#allocation4], 128, 128, 8
    $region73: #{tpu_custom_call.1} parent=1 // pred_fallthru
      _
    // Predicated region
    $region74: #{tpu_custom_call.1} parent=1 // pred_check
      _
    $region75: #{tpu_custom_call.1} parent=1 // pred_check_branch
      %359 = sbr.rel (0) target = $region77
    $region76: #{tpu_custom_call.1} parent=1 // pred_region
      %360 = dma.done [#allocation4], 512
    $region77: #{tpu_custom_call.1} parent=1 // pred_fallthru
      _
    %361 = vsyncpa [#allocation3], 1
    %362 = vsyncpa [#allocation15], 1
    %363 = vsyncpa [#allocation4], 1
    %364 = vsyncpa [#allocation5], 1
    %365 = vsyncpa [#allocation9], 1
    %366 = vsyncpa [#allocation6], 1
    %367 = vsyncpa [#allocation11], 1

</llo_original>
